<compile_context>
chip_gen: v7x
topology: tpu7x:2x2x1
jax: 0.10.0
libtpu: 0.0.40
codegen_flags: <defaults>
</compile_context>

<pallas_src>
import functools

import jax
import jax.numpy as jnp
from jax.experimental import pallas as pl


_LANE = 128
_SUBLANE = 8


def _round_up(n, m):
    return ((n + m - 1) // m) * m


# ----------------------------- fused Pallas kernel ---------------------------

def _fused_forward_kernel(x_ref, *refs, hidden_dim, layer_dim):
    """Fused multi-layer LSTM (seq_len=1, zero initial state) + final Linear.

    refs layout: [w_igo_t_0, b_igo_0, ..., w_igo_t_{L-1}, b_igo_{L-1},
                  w_fc_t, b_fc, o_ref]

    With h0 = c0 = 0 and a single timestep (PyTorch gate order i,f,g,o), the
    forget gate and the W_hh matmul are dead, so per layer:
        gates = x @ W_igo^T + (b_ih + b_hh)[igo]     # [B, 3H]
        c     = sigmoid(i) * tanh(g)
        h     = sigmoid(o) * tanh(c)
    """
    o_ref = refs[-1]
    w_fc_ref, b_fc_ref = refs[-3], refs[-2]
    H = hidden_dim

    h = x_ref[...].astype(jnp.float32)
    for layer in range(layer_dim):                    # statically unrolled
        w = refs[2 * layer][...]                      # [in_l, 3H]
        b = refs[2 * layer + 1][...]                  # [1, 3H]
        gates = jnp.dot(h, w, preferred_element_type=jnp.float32) + b
        i_g = jax.nn.sigmoid(gates[:, 0 * H:1 * H])
        g_g = jnp.tanh(gates[:, 1 * H:2 * H])
        o_g = jax.nn.sigmoid(gates[:, 2 * H:3 * H])
        c = i_g * g_g
        h = o_g * jnp.tanh(c)

    out = jnp.dot(h, w_fc_ref[...], preferred_element_type=jnp.float32) + b_fc_ref[...]
    o_ref[...] = out.astype(o_ref.dtype)              # lane-dense (128-wide) store


# ------------------------------ wrapper ---------------------------------------

def _full_spec(shape):
    # Whole-array single block (grid=()); shapes are tiny, no tiling needed.
    # TODO(synk): if hidden_dim/batch are ever scaled up, K-tile the weights and
    # set pltpu.CompilerParams(vmem_limit_bytes=...) (v7x has only 64 MiB VMEM).
    return pl.BlockSpec(shape, lambda: tuple(0 for _ in shape))


def lstm_model_forward(params, x, hidden_dim, layer_dim, output_dim):
    """Equivalent to LSTM_Model.forward:
       x.view(B,1,-1) -> multi-layer LSTM (seq_len=1, h0=c0=0) -> fc(out[:, -1, :])
    """
    B = x.shape[0]
    xt = x.reshape(B, -1).astype(jnp.float32)          # the single timestep
    B_pad = _round_up(max(B, 1), _SUBLANE)             # sublane-align batch
    if B_pad != B:
        xt = jnp.pad(xt, ((0, B_pad - B), (0, 0)))

    w_fc_pad = params["fc"]["w_t_pad"]                 # [H, out_pad]
    b_fc_pad = params["fc"]["b_pad"]                   # [1, out_pad]
    out_pad = w_fc_pad.shape[1]

    inputs = [xt]
    for layer in range(layer_dim):
        p = params["lstm"][layer]
        inputs.append(p["w_igo_t"])                    # [in_l, 3H]
        inputs.append(p["b_igo"])                      # [1, 3H]
    inputs.append(w_fc_pad)
    inputs.append(b_fc_pad)

    kernel = functools.partial(_fused_forward_kernel,
                               hidden_dim=hidden_dim, layer_dim=layer_dim)

    out_padded = pl.pallas_call(
        kernel,
        out_shape=jax.ShapeDtypeStruct((B_pad, out_pad), jnp.float32),
        in_specs=[_full_spec(a.shape) for a in inputs],
        out_specs=_full_spec((B_pad, out_pad)),
    )(*inputs)

    return out_padded[:B, :output_dim]


# --------------------------- parameter init -----------------------------------

def init_params(key, input_dim, hidden_dim, layer_dim, output_dim):
    """PyTorch-style uniform(+-1/sqrt(hidden)) init.

    Keeps the full PyTorch-layout parameters (w_ih, w_hh, b_ih, b_hh, gate order
    i,f,g,o) for the reference, and precomputes kernel-ready operands:
      w_igo_t : [in_l, 3H]   (transposed i,g,o columns of W_ih — f gate dropped)
      b_igo   : [1, 3H]      (b_ih + b_hh for i,g,o)
      fc w_t_pad / b_pad     (lane-padded to 128 for an unmasked output store)
    """
    H = hidden_dim
    k = 1.0 / jnp.sqrt(jnp.float32(H))
    params = {"lstm": [], "fc": None}
    for layer in range(layer_dim):
        in_l = input_dim if layer == 0 else H
        key, k1, k2, k3, k4 = jax.random.split(key, 5)
        w_ih = jax.random.uniform(k1, (4 * H, in_l), jnp.float32, -k, k)
        w_hh = jax.random.uniform(k2, (4 * H, H), jnp.float32, -k, k)
        b_ih = jax.random.uniform(k3, (4 * H,), jnp.float32, -k, k)
        b_hh = jax.random.uniform(k4, (4 * H,), jnp.float32, -k, k)

        # i, g, o gate rows (PyTorch order i,f,g,o): drop the forget gate.
        w_igo = jnp.concatenate(
            [w_ih[0:H], w_ih[2 * H:3 * H], w_ih[3 * H:4 * H]], axis=0)   # [3H, in_l]
        b_sum = b_ih + b_hh
        b_igo = jnp.concatenate(
            [b_sum[0:H], b_sum[2 * H:3 * H], b_sum[3 * H:4 * H]], axis=0)

        params["lstm"].append({
            # full PyTorch params (used by the exact reference)
            "w_ih": w_ih, "w_hh": w_hh, "b_ih": b_ih, "b_hh": b_hh,
            # kernel-ready operands
            "w_igo_t": w_igo.T,                        # [in_l, 3H]
            "b_igo": b_igo.reshape(1, 3 * H),          # [1, 3H]
        })

    key, k5, k6 = jax.random.split(key, 3)
    w_fc = jax.random.uniform(k5, (output_dim, H), jnp.float32, -k, k)
    b_fc = jax.random.uniform(k6, (output_dim,), jnp.float32, -k, k)
    out_pad = _round_up(output_dim, _LANE)
    w_t = w_fc.T                                       # [H, out]
    params["fc"] = {
        "w": w_fc, "b": b_fc,
        # lane-padded copies used by the kernel (zero columns are sliced off)
        "w_t_pad": jnp.pad(w_t, ((0, 0), (0, out_pad - output_dim))),
        "b_pad": jnp.pad(b_fc.reshape(1, output_dim),
                         ((0, 0), (0, out_pad - output_dim))),
    }
    return params


# ------------------------------ reference -------------------------------------

def _reference_forward(params, x, hidden_dim, layer_dim):
    """Exact LSTM equations (incl. W_hh and forget gate) with zero initial state."""
    B = x.shape[0]
    H = hidden_dim
    h_in = x.reshape(B, -1)
    for layer in range(layer_dim):
        p = params["lstm"][layer]
        h0 = jnp.zeros((B, H), jnp.float32)
        c0 = jnp.zeros((B, H), jnp.float32)
        gates = h_in @ p["w_ih"].T + h0 @ p["w_hh"].T + p["b_ih"] + p["b_hh"]
        i = jax.nn.sigmoid(gates[:, 0:H])
        f = jax.nn.sigmoid(gates[:, H:2 * H])
        g = jnp.tanh(gates[:, 2 * H:3 * H])
        o = jax.nn.sigmoid(gates[:, 3 * H:4 * H])
        c = f * c0 + i * g
        h_in = o * jnp.tanh(c)
    return h_in @ params["fc"]["w"].T + params["fc"]["b"]


# --------------------------------- main ----------------------------------------

if __name__ == "__main__":
    batch = 2
    spatial = 4                # x: (B, 4, 4) -> view(B, 1, 16)
    input_dim = spatial * spatial
    hidden_dim = 32
    layer_dim = 2
    output_dim = 8

    key = jax.random.PRNGKey(0)
    key, xkey = jax.random.split(key)
    x = jax.random.normal(xkey, (batch, spatial, spatial), jnp.float32)

    params = init_params(key, input_dim, hidden_dim, layer_dim, output_dim)

    out = lstm_model_forward(params, x, hidden_dim, layer_dim, output_dim)
    out = jax.block_until_ready(out)

    ref = _reference_forward(params, x, hidden_dim, layer_dim)
    assert out.shape == (batch, output_dim), out.shape
    assert jnp.allclose(out, ref, atol=1e-5, rtol=1e-5), "mismatch vs reference"

    print("KERNEL_OK")
</pallas_src>

<mosaic_0001>
module attributes {stable_mosaic.version = 11 : i64} {
  func.func @_fused_forward_kernel(%arg0: memref<8x16xf32, #tpu.memory_space<vmem>>, %arg1: memref<16x96xf32, #tpu.memory_space<vmem>>, %arg2: memref<1x96xf32, #tpu.memory_space<vmem>>, %arg3: memref<32x96xf32, #tpu.memory_space<vmem>>, %arg4: memref<1x96xf32, #tpu.memory_space<vmem>>, %arg5: memref<32x128xf32, #tpu.memory_space<vmem>>, %arg6: memref<1x128xf32, #tpu.memory_space<vmem>>, %arg7: memref<8x128xf32, #tpu.memory_space<vmem>>) attributes {dimension_semantics = [], scalar_prefetch = 0 : i64, scratch_operands = 0 : i64, tpu.core_type = #tpu.core_type<tc>} {
    %c0 = arith.constant 0 : index
    %c0_0 = arith.constant 0 : index
    %0 = vector.load %arg0[%c0, %c0_0] : memref<8x16xf32, #tpu.memory_space<vmem>>, vector<8x16xf32>
    %c0_1 = arith.constant 0 : index
    %c0_2 = arith.constant 0 : index
    %1 = vector.load %arg1[%c0_1, %c0_2] : memref<16x96xf32, #tpu.memory_space<vmem>>, vector<16x96xf32>
    %c0_3 = arith.constant 0 : index
    %c0_4 = arith.constant 0 : index
    %2 = vector.load %arg2[%c0_3, %c0_4] : memref<1x96xf32, #tpu.memory_space<vmem>>, vector<1x96xf32>
    %cst = arith.constant dense<0.000000e+00> : vector<8x96xf32>
    %3 = tpu.matmul %0, %1, %cst {dimension_numbers = #tpu.dot_dimension_numbers<[1], [0], [0], [1], [0, 0, 1, 1], [], []>} : vector<8x16xf32>, vector<16x96xf32>, vector<8x96xf32> -> vector<8x96xf32>
    %4 = vector.broadcast %2 : vector<1x96xf32> to vector<8x96xf32>
    %5 = arith.addf %3, %4 : vector<8x96xf32>
    %6 = vector.extract_strided_slice %5 {offsets = [0, 0], sizes = [8, 32], strides = [1, 1]} : vector<8x96xf32> to vector<8x32xf32>
    %7 = arith.negf %6 : vector<8x32xf32>
    %8 = math.exp %7 : vector<8x32xf32>
    %cst_5 = arith.constant 1.000000e+00 : f32
    %9 = vector.broadcast %cst_5 : f32 to vector<8x32xf32>
    %10 = arith.addf %9, %8 : vector<8x32xf32>
    %11 = arith.divf %9, %10 : vector<8x32xf32>
    %12 = vector.extract_strided_slice %5 {offsets = [0, 32], sizes = [8, 32], strides = [1, 1]} : vector<8x96xf32> to vector<8x32xf32>
    %13 = math.tanh %12 : vector<8x32xf32>
    %14 = vector.extract_strided_slice %5 {offsets = [0, 64], sizes = [8, 32], strides = [1, 1]} : vector<8x96xf32> to vector<8x32xf32>
    %15 = arith.negf %14 : vector<8x32xf32>
    %16 = math.exp %15 : vector<8x32xf32>
    %cst_6 = arith.constant 1.000000e+00 : f32
    %17 = vector.broadcast %cst_6 : f32 to vector<8x32xf32>
    %18 = arith.addf %17, %16 : vector<8x32xf32>
    %19 = arith.divf %17, %18 : vector<8x32xf32>
    %20 = arith.mulf %11, %13 : vector<8x32xf32>
    %21 = math.tanh %20 : vector<8x32xf32>
    %22 = arith.mulf %19, %21 : vector<8x32xf32>
    %c0_7 = arith.constant 0 : index
    %c0_8 = arith.constant 0 : index
    %23 = vector.load %arg3[%c0_7, %c0_8] : memref<32x96xf32, #tpu.memory_space<vmem>>, vector<32x96xf32>
    %c0_9 = arith.constant 0 : index
    %c0_10 = arith.constant 0 : index
    %24 = vector.load %arg4[%c0_9, %c0_10] : memref<1x96xf32, #tpu.memory_space<vmem>>, vector<1x96xf32>
    %cst_11 = arith.constant dense<0.000000e+00> : vector<8x96xf32>
    %25 = tpu.matmul %22, %23, %cst_11 {dimension_numbers = #tpu.dot_dimension_numbers<[1], [0], [0], [1], [0, 0, 1, 1], [], []>} : vector<8x32xf32>, vector<32x96xf32>, vector<8x96xf32> -> vector<8x96xf32>
    %26 = vector.broadcast %24 : vector<1x96xf32> to vector<8x96xf32>
    %27 = arith.addf %25, %26 : vector<8x96xf32>
    %28 = vector.extract_strided_slice %27 {offsets = [0, 0], sizes = [8, 32], strides = [1, 1]} : vector<8x96xf32> to vector<8x32xf32>
    %29 = arith.negf %28 : vector<8x32xf32>
    %30 = math.exp %29 : vector<8x32xf32>
    %cst_12 = arith.constant 1.000000e+00 : f32
    %31 = vector.broadcast %cst_12 : f32 to vector<8x32xf32>
    %32 = arith.addf %31, %30 : vector<8x32xf32>
    %33 = arith.divf %31, %32 : vector<8x32xf32>
    %34 = vector.extract_strided_slice %27 {offsets = [0, 32], sizes = [8, 32], strides = [1, 1]} : vector<8x96xf32> to vector<8x32xf32>
    %35 = math.tanh %34 : vector<8x32xf32>
    %36 = vector.extract_strided_slice %27 {offsets = [0, 64], sizes = [8, 32], strides = [1, 1]} : vector<8x96xf32> to vector<8x32xf32>
    %37 = arith.negf %36 : vector<8x32xf32>
    %38 = math.exp %37 : vector<8x32xf32>
    %cst_13 = arith.constant 1.000000e+00 : f32
    %39 = vector.broadcast %cst_13 : f32 to vector<8x32xf32>
    %40 = arith.addf %39, %38 : vector<8x32xf32>
    %41 = arith.divf %39, %40 : vector<8x32xf32>
    %42 = arith.mulf %33, %35 : vector<8x32xf32>
    %43 = math.tanh %42 : vector<8x32xf32>
    %44 = arith.mulf %41, %43 : vector<8x32xf32>
    %c0_14 = arith.constant 0 : index
    %c0_15 = arith.constant 0 : index
    %45 = vector.load %arg5[%c0_14, %c0_15] : memref<32x128xf32, #tpu.memory_space<vmem>>, vector<32x128xf32>
    %cst_16 = arith.constant dense<0.000000e+00> : vector<8x128xf32>
    %46 = tpu.matmul %44, %45, %cst_16 {dimension_numbers = #tpu.dot_dimension_numbers<[1], [0], [0], [1], [0, 0, 1, 1], [], []>} : vector<8x32xf32>, vector<32x128xf32>, vector<8x128xf32> -> vector<8x128xf32>
    %c0_17 = arith.constant 0 : index
    %c0_18 = arith.constant 0 : index
    %47 = vector.load %arg6[%c0_17, %c0_18] : memref<1x128xf32, #tpu.memory_space<vmem>>, vector<1x128xf32>
    %48 = vector.broadcast %47 : vector<1x128xf32> to vector<8x128xf32>
    %49 = arith.addf %46, %48 : vector<8x128xf32>
    %c0_19 = arith.constant 0 : index
    %c0_20 = arith.constant 0 : index
    %50 = vector.load %arg7[%c0_19, %c0_20] : memref<8x128xf32, #tpu.memory_space<vmem>>, vector<8x128xf32>
    tpu.vector_store %arg7[%c0_19, %c0_20], %49 {strides = array<i32>} : memref<8x128xf32, #tpu.memory_space<vmem>>, vector<8x128xf32>,
    return
  }
}

</mosaic_0001>

<llo_original>
// kernel: tpu_custom_call.1
$region0: #{tpu_custom_call.1}
  #allocation0 [shape = 'u32[]', space=smem, size = 0x4, offset = 0x4, fixed_abs, tag = 'smem constant byte address 0x4 - core index']
  #allocation1 [shape = 'u32[144,128]{1,0:T(1,128)}', space=vmem, size = 0x12000, scoped, tag = 'internal scratch']
  %s0 = inlined_call_operand.hbm [shape: f32[8,16], index: 0, kind: input, shape index: {}]
  %s1 = inlined_call_operand.hbm [shape: f32[16,96], index: 1, kind: input, shape index: {}]
  %s2 = inlined_call_operand.vmem [shape: f32[1,96], index: 2, kind: input, shape index: {}]
  %s3 = inlined_call_operand.hbm [shape: f32[32,96], index: 3, kind: input, shape index: {}]
  %s4 = inlined_call_operand.vmem [shape: f32[1,96], index: 4, kind: input, shape index: {}]
  %s5 = inlined_call_operand.hbm [shape: f32[32,128], index: 5, kind: input, shape index: {}]
  %s6 = inlined_call_operand.vmem [shape: f32[1,128], index: 6, kind: input, shape index: {}]
  %s7 = inlined_call_operand.hbm [shape: f32[8,128], index: 7, kind: output, shape index: {}]
  %s8 = sld [smem:[#allocation0]]
  $region54: #{tpu_custom_call.1} parent=0
    _
  %s10 = ssub.s32 1, %s8
  %s11 = scalar_select 0, %s10, %s8
  $region1: #{tpu_custom_call.1} parent=0
    #allocation2 [shape = 'u8[4096]{0}', space=vmem, size = 0x1000, scoped, tag = 'input window, operand 0, single buffered']
    #allocation3 [shape = 's32[1]{0}', space=sflag, size = 0x4, scoped, tag = 'scoped memory for tpu_custom_call.1']
    #allocation4 [shape = 's32[1]{0}', space=sflag, size = 0x4, scoped, tag = 'scoped memory for tpu_custom_call.1']
    #allocation5 [shape = 'u8[8192]{0}', space=vmem, size = 0x2000, scoped, tag = 'input window, operand 1, single buffered']
    #allocation6 [shape = 's32[1]{0}', space=sflag, size = 0x4, scoped, tag = 'scoped memory for tpu_custom_call.1']
    #allocation7 [shape = 'u8[16384]{0}', space=vmem, size = 0x4000, scoped, tag = 'input window, operand 3, single buffered']
    #allocation8 [shape = 'u8[16384]{0}', space=vmem, size = 0x4000, scoped, tag = 'input window, operand 5, single buffered']
    #allocation9 [shape = 's32[1]{0}', space=sflag, size = 0x4, scoped, tag = 'scoped memory for tpu_custom_call.1']
    #allocation10 [shape = 'u8[4096]{0}', space=vmem, size = 0x1000, scoped, tag = 'output window, operand 0, single buffered']
    %12 = vsyncpa [#allocation3], 0
    %13 = vsyncpa [#allocation6], 0
    %14 = vsyncpa [#allocation9], 0
    %15 = vsyncpa [#allocation4], 0
    // Predicated region
    $region2: #{tpu_custom_call.1} parent=1 // pred_check
      _
    $region3: #{tpu_custom_call.1} parent=1 // pred_check_branch
      %17 = sbr.rel (0) target = $region5
    $region4: #{tpu_custom_call.1} parent=1 // pred_region
      %s19 = ssub.s32 128, 128
      %20 = vsyncadd [#allocation3], %s19
      %s22 = sshll.u32 [#allocation2], 4
      %s23 = int_to_ptr.vmem [resolvable:$true] %s22
      %25 = dma.hbm_to_vmem [thread:$0]  %s0, 128, %s23, [#allocation3]
    $region5: #{tpu_custom_call.1} parent=1 // pred_fallthru
      _
    // Predicated region
    $region6: #{tpu_custom_call.1} parent=1 // pred_check
      _
    $region7: #{tpu_custom_call.1} parent=1 // pred_check_branch
      %27 = sbr.rel (0) target = $region9
    $region8: #{tpu_custom_call.1} parent=1 // pred_region
      %s29 = ssub.s32 256, 256
      %30 = vsyncadd [#allocation6], %s29
      %s31 = sshll.u32 [#allocation5], 4
      %s32 = int_to_ptr.vmem [resolvable:$true] %s31
      %37 = dma.hbm_to_vmem [thread:$0]  %s1, 256, %s32, [#allocation6], 128, 128, 8
    $region9: #{tpu_custom_call.1} parent=1 // pred_fallthru
      _
    // Predicated region
    $region10: #{tpu_custom_call.1} parent=1 // pred_check
      _
    $region11: #{tpu_custom_call.1} parent=1 // pred_check_branch
      %39 = sbr.rel (0) target = $region13
    $region12: #{tpu_custom_call.1} parent=1 // pred_region
      _
    $region13: #{tpu_custom_call.1} parent=1 // pred_fallthru
      _
    // Predicated region
    $region14: #{tpu_custom_call.1} parent=1 // pred_check
      _
    $region15: #{tpu_custom_call.1} parent=1 // pred_check_branch
      %41 = sbr.rel (0) target = $region17
    $region16: #{tpu_custom_call.1} parent=1 // pred_region
      %s43 = ssub.s32 512, 512
      %44 = vsyncadd [#allocation6], %s43
      %s45 = sshll.u32 [#allocation7], 4
      %s46 = int_to_ptr.vmem [resolvable:$true] %s45
      %51 = dma.hbm_to_vmem [thread:$0]  %s3, 512, %s46, [#allocation6], 128, 128, 8
    $region17: #{tpu_custom_call.1} parent=1 // pred_fallthru
      _
    // Predicated region
    $region18: #{tpu_custom_call.1} parent=1 // pred_check
      _
    $region19: #{tpu_custom_call.1} parent=1 // pred_check_branch
      %53 = sbr.rel (0) target = $region21
    $region20: #{tpu_custom_call.1} parent=1 // pred_region
      _
    $region21: #{tpu_custom_call.1} parent=1 // pred_fallthru
      _
    // Predicated region
    $region22: #{tpu_custom_call.1} parent=1 // pred_check
      _
    $region23: #{tpu_custom_call.1} parent=1 // pred_check_branch
      %55 = sbr.rel (0) target = $region25
    $region24: #{tpu_custom_call.1} parent=1 // pred_region
      %s57 = ssub.s32 512, 512
      %58 = vsyncadd [#allocation9], %s57
      %s59 = sshll.u32 [#allocation8], 4
      %s60 = int_to_ptr.vmem [resolvable:$true] %s59
      %65 = dma.hbm_to_vmem [thread:$0]  %s5, 512, %s60, [#allocation9], 128, 128, 8
    $region25: #{tpu_custom_call.1} parent=1 // pred_fallthru
      _
    // Predicated region
    $region26: #{tpu_custom_call.1} parent=1 // pred_check
      _
    $region27: #{tpu_custom_call.1} parent=1 // pred_check_branch
      %67 = sbr.rel (0) target = $region29
    $region28: #{tpu_custom_call.1} parent=1 // pred_region
      _
    $region29: #{tpu_custom_call.1} parent=1 // pred_fallthru
      _
    // Predicated region
    $region30: #{tpu_custom_call.1} parent=1 // pred_check
      _
    $region31: #{tpu_custom_call.1} parent=1 // pred_check_branch
      %69 = sbr.rel (0) target = $region33
    $region32: #{tpu_custom_call.1} parent=1 // pred_region
      %70 = dma.done [#allocation3], 128
    $region33: #{tpu_custom_call.1} parent=1 // pred_fallthru
      _
    // Predicated region
    $region34: #{tpu_custom_call.1} parent=1 // pred_check
      _
    $region35: #{tpu_custom_call.1} parent=1 // pred_check_branch
      %72 = sbr.rel (0) target = $region37
    $region36: #{tpu_custom_call.1} parent=1 // pred_region
      %73 = dma.done [#allocation6], 256
    $region37: #{tpu_custom_call.1} parent=1 // pred_fallthru
      _
    // Predicated region
    $region38: #{tpu_custom_call.1} parent=1 // pred_check
      _
    $region39: #{tpu_custom_call.1} parent=1 // pred_check_branch
      %75 = sbr.rel (0) target = $region41
    $region40: #{tpu_custom_call.1} parent=1 // pred_region
      %76 = dma.done [#allocation6], 512
    $region41: #{tpu_custom_call.1} parent=1 // pred_fallthru
      _
    // Predicated region
    $region42: #{tpu_custom_call.1} parent=1 // pred_check
      _
    $region43: #{tpu_custom_call.1} parent=1 // pred_check_branch
      %78 = sbr.rel (0) target = $region45
    $region44: #{tpu_custom_call.1} parent=1 // pred_region
      %79 = dma.done [#allocation9], 512
    $region45: #{tpu_custom_call.1} parent=1 // pred_fallthru
      _
    %v80 = vld [vmem:[#allocation2] sm:$0xff]
    %v81 = vld [vmem:[#allocation5] sm:$0xff]
    %v82 = vld [vmem:[#allocation5 + $0x8] sm:$0xff]
    %v83 = vld [vmem:[%s2] sm:$0x1]
    %v85 = vlaneseq
    %v86 = vshrl.u32 %v85, 7
    %v87 = vsub.s32 0, %v86
    %v88 = vrot.slane %v83, %v87
    %vm90 = vcmask 130048
    %v92 = vsel %vm90, %v80, 0
    %94 = vmatprep.subr.mxu0 0.0
    %95 = vmatpush1.msra.mxu0 %v81
    %96 = vmatprep.subr.mxu0 0.0
    %97 = vmatpush1.msra.mxu0 %v82
    %98 = vmatprep.subr.mxu0 0.0
    %99 = vmatpush1.msra.mxu0 0.0
    %100 = vmatprep.subr.mxu0 0.0
    %101 = vmatpush1.msra.mxu0 0.0
    %102 = vmatprep.subr.mxu0 0.0
    %103 = vmatpush1.msra.mxu0 0.0
    %104 = vmatprep.subr.mxu0 0.0
    %105 = vmatpush1.msra.mxu0 0.0
    %106 = vmatprep.subr.mxu0 0.0
    %107 = vmatpush1.msra.mxu0 0.0
    %108 = vmatprep.subr.mxu0 0.0
    %109 = vmatpush1.msra.mxu0 0.0
    %110 = vmatprep.subr.mxu0 0.0
    %111 = vmatpush1.msra.mxu0 0.0
    %112 = vmatprep.subr.mxu0 0.0
    %113 = vmatpush1.msra.mxu0 0.0
    %114 = vmatprep.subr.mxu0 0.0
    %115 = vmatpush1.msra.mxu0 0.0
    %116 = vmatprep.subr.mxu0 0.0
    %117 = vmatpush1.msra.mxu0 0.0
    %118 = vmatprep.subr.mxu0 0.0
    %119 = vmatpush1.msra.mxu0 0.0
    %120 = vmatprep.subr.mxu0 0.0
    %121 = vmatpush1.msra.mxu0 0.0
    %122 = vmatprep.subr.mxu0 0.0
    %123 = vmatpush1.msra.mxu0 0.0
    %124 = vmatprep.subr.mxu0 0.0
    %125 = vmatpush1.msra.mxu0 0.0
    %126 = vmatprep.subr.mxu0 0.0
    %127 = vmatpush1.msra.mxu0 0.0
    %128 = vmatprep.subr.mxu0 0.0
    %129 = vmatpush1.msra.mxu0 0.0
    %130 = vmatprep.subr.mxu0 0.0
    %131 = vmatpush1.msra.mxu0 0.0
    %132 = vmatprep.subr.mxu0 0.0
    %133 = vmatpush1.msra.mxu0 0.0
    %134 = vmatprep.subr.mxu0 0.0
    %135 = vmatpush1.msra.mxu0 0.0
    %136 = vmatprep.subr.mxu0 0.0
    %137 = vmatpush1.msra.mxu0 0.0
    %138 = vmatprep.subr.mxu0 0.0
    %139 = vmatpush1.msra.mxu0 0.0
    %140 = vmatprep.subr.mxu0 0.0
    %141 = vmatpush1.msra.mxu0 0.0
    %142 = vmatprep.subr.mxu0 0.0
    %143 = vmatpush1.msra.mxu0 0.0
    %144 = vmatprep.subr.mxu0 0.0
    %145 = vmatpush1.msra.mxu0 0.0
    %146 = vmatprep.subr.mxu0 0.0
    %147 = vmatpush1.msra.mxu0 0.0
    %148 = vmatprep.subr.mxu0 0.0
    %149 = vmatpush1.msra.mxu0 0.0
    %150 = vmatprep.subr.mxu0 0.0
    %151 = vmatpush1.msra.mxu0 0.0
    %152 = vmatprep.subr.mxu0 0.0
    %153 = vmatpush1.msra.mxu0 0.0
    %154 = vmatprep.subr.mxu0 0.0
    %155 = vmatpush1.msra.mxu0 0.0
    %156 = vmatprep.subr.mxu0 0.0
    %157 = vmatpush1.msra.mxu0 0.0
    %158 = vmatprep.mubr.f32.mxu0 0.0
    %159 = vmatmul.mubr.f32.gmra.mrb[0].mxu0 %v92
    %v160 = vpop.f32.mrb[0].mxu0
    %v161 = vadd.f32 %v88, %v160
    %v162 = vpop.f32.mrb[0].mxu0
    %163 = vdwg.mxu0
    %v164 = vxor.u32 %v161, 2147483648
    %v165 = vmul.f32 %v164, 1.442695
    %v166 = vpow.pop %v165
    %v167 = vadd.f32 %v166, 1.0
    %v168 = vrcp.pop %v167
    %v169 = vmul.f32 1.0, %v168
    %v170 = vtanh.pop %v161
    %172 = vrot.lane.b32.xlu0 %v170, 96
    %v173 = vpop.permute.xlu0 %172
    %v175 = vmul.f32 %v169, %v173
    %v176 = vtanh.pop %v175
    %178 = vrot.lane.b32.xlu0 %v176, 64
    %v179 = vpop.permute.xlu0 %178
    %v181 = vmul.f32 %v169, %v179
    %v182 = vld [vmem:[#allocation7] sm:$0xff]
    %v183 = vld [vmem:[#allocation7 + $0x8] sm:$0xff]
    %v184 = vld [vmem:[#allocation7 + $0x10] sm:$0xff]
    %v185 = vld [vmem:[#allocation7 + $0x18] sm:$0xff]
    %v186 = vld [vmem:[%s4] sm:$0x1]
    %v188 = vlaneseq
    %v189 = vshrl.u32 %v188, 7
    %v190 = vsub.s32 0, %v189
    %v191 = vrot.slane %v186, %v190
    %194 = vrot.lane.b32.xlu0 %v181, 64
    %v195 = vpop.permute.xlu0 %194
    %vm196 = vcmask 261120
    %v197 = vsel %vm196, %v195, 0
    %199 = vmatprep.subr.mxu0 0.0
    %200 = vmatpush1.msra.mxu0 %v182
    %201 = vmatprep.subr.mxu0 0.0
    %202 = vmatpush1.msra.mxu0 %v183
    %203 = vmatprep.subr.mxu0 0.0
    %204 = vmatpush1.msra.mxu0 %v184
    %205 = vmatprep.subr.mxu0 0.0
    %206 = vmatpush1.msra.mxu0 %v185
    %207 = vmatprep.subr.mxu0 0.0
    %208 = vmatpush1.msra.mxu0 0.0
    %209 = vmatprep.subr.mxu0 0.0
    %210 = vmatpush1.msra.mxu0 0.0
    %211 = vmatprep.subr.mxu0 0.0
    %212 = vmatpush1.msra.mxu0 0.0
    %213 = vmatprep.subr.mxu0 0.0
    %214 = vmatpush1.msra.mxu0 0.0
    %215 = vmatprep.subr.mxu0 0.0
    %216 = vmatpush1.msra.mxu0 0.0
    %217 = vmatprep.subr.mxu0 0.0
    %218 = vmatpush1.msra.mxu0 0.0
    %219 = vmatprep.subr.mxu0 0.0
    %220 = vmatpush1.msra.mxu0 0.0
    %221 = vmatprep.subr.mxu0 0.0
    %222 = vmatpush1.msra.mxu0 0.0
    %223 = vmatprep.subr.mxu0 0.0
    %224 = vmatpush1.msra.mxu0 0.0
    %225 = vmatprep.subr.mxu0 0.0
    %226 = vmatpush1.msra.mxu0 0.0
    %227 = vmatprep.subr.mxu0 0.0
    %228 = vmatpush1.msra.mxu0 0.0
    %229 = vmatprep.subr.mxu0 0.0
    %230 = vmatpush1.msra.mxu0 0.0
    %231 = vmatprep.subr.mxu0 0.0
    %232 = vmatpush1.msra.mxu0 0.0
    %233 = vmatprep.subr.mxu0 0.0
    %234 = vmatpush1.msra.mxu0 0.0
    %235 = vmatprep.subr.mxu0 0.0
    %236 = vmatpush1.msra.mxu0 0.0
    %237 = vmatprep.subr.mxu0 0.0
    %238 = vmatpush1.msra.mxu0 0.0
    %239 = vmatprep.subr.mxu0 0.0
    %240 = vmatpush1.msra.mxu0 0.0
    %241 = vmatprep.subr.mxu0 0.0
    %242 = vmatpush1.msra.mxu0 0.0
    %243 = vmatprep.subr.mxu0 0.0
    %244 = vmatpush1.msra.mxu0 0.0
    %245 = vmatprep.subr.mxu0 0.0
    %246 = vmatpush1.msra.mxu0 0.0
    %247 = vmatprep.subr.mxu0 0.0
    %248 = vmatpush1.msra.mxu0 0.0
    %249 = vmatprep.subr.mxu0 0.0
    %250 = vmatpush1.msra.mxu0 0.0
    %251 = vmatprep.subr.mxu0 0.0
    %252 = vmatpush1.msra.mxu0 0.0
    %253 = vmatprep.subr.mxu0 0.0
    %254 = vmatpush1.msra.mxu0 0.0
    %255 = vmatprep.subr.mxu0 0.0
    %256 = vmatpush1.msra.mxu0 0.0
    %257 = vmatprep.subr.mxu0 0.0
    %258 = vmatpush1.msra.mxu0 0.0
    %259 = vmatprep.subr.mxu0 0.0
    %260 = vmatpush1.msra.mxu0 0.0
    %261 = vmatprep.subr.mxu0 0.0
    %262 = vmatpush1.msra.mxu0 0.0
    %263 = vmatprep.mubr.f32.mxu0 0.0
    %264 = vmatmul.mubr.f32.gmra.mrb[0].mxu0 %v197
    %v265 = vpop.f32.mrb[0].mxu0
    %v266 = vadd.f32 %v191, %v265
    %v267 = vpop.f32.mrb[0].mxu0
    %268 = vdwg.mxu0
    %v269 = vxor.u32 %v266, 2147483648
    %v270 = vmul.f32 %v269, 1.442695
    %v271 = vpow.pop %v270
    %v272 = vadd.f32 %v271, 1.0
    %v273 = vrcp.pop %v272
    %v274 = vmul.f32 1.0, %v273
    %v275 = vtanh.pop %v266
    %277 = vrot.lane.b32.xlu0 %v275, 96
    %v278 = vpop.permute.xlu0 %277
    %v280 = vmul.f32 %v274, %v278
    %v281 = vtanh.pop %v280
    %283 = vrot.lane.b32.xlu0 %v281, 64
    %v284 = vpop.permute.xlu0 %283
    %v286 = vmul.f32 %v274, %v284
    %v287 = vld [vmem:[#allocation8] sm:$0xff]
    %v288 = vld [vmem:[#allocation8 + $0x8] sm:$0xff]
    %v289 = vld [vmem:[#allocation8 + $0x10] sm:$0xff]
    %v290 = vld [vmem:[#allocation8 + $0x18] sm:$0xff]
    %v291 = vld [vmem:[%s6] sm:$0x1]
    %v293 = vlaneseq
    %v294 = vshrl.u32 %v293, 7
    %v295 = vsub.s32 0, %v294
    %v296 = vrot.slane %v291, %v295
    %299 = vrot.lane.b32.xlu0 %v286, 64
    %v300 = vpop.permute.xlu0 %299
    %v301 = vsel %vm196, %v300, 0
    %303 = vmatprep.subr.mxu0 0.0
    %304 = vmatpush1.msra.mxu0 %v287
    %305 = vmatprep.subr.mxu0 0.0
    %306 = vmatpush1.msra.mxu0 %v288
    %307 = vmatprep.subr.mxu0 0.0
    %308 = vmatpush1.msra.mxu0 %v289
    %309 = vmatprep.subr.mxu0 0.0
    %310 = vmatpush1.msra.mxu0 %v290
    %311 = vmatprep.subr.mxu0 0.0
    %312 = vmatpush1.msra.mxu0 0.0
    %313 = vmatprep.subr.mxu0 0.0
    %314 = vmatpush1.msra.mxu0 0.0
    %315 = vmatprep.subr.mxu0 0.0
    %316 = vmatpush1.msra.mxu0 0.0
    %317 = vmatprep.subr.mxu0 0.0
    %318 = vmatpush1.msra.mxu0 0.0
    %319 = vmatprep.subr.mxu0 0.0
    %320 = vmatpush1.msra.mxu0 0.0
    %321 = vmatprep.subr.mxu0 0.0
    %322 = vmatpush1.msra.mxu0 0.0
    %323 = vmatprep.subr.mxu0 0.0
    %324 = vmatpush1.msra.mxu0 0.0
    %325 = vmatprep.subr.mxu0 0.0
    %326 = vmatpush1.msra.mxu0 0.0
    %327 = vmatprep.subr.mxu0 0.0
    %328 = vmatpush1.msra.mxu0 0.0
    %329 = vmatprep.subr.mxu0 0.0
    %330 = vmatpush1.msra.mxu0 0.0
    %331 = vmatprep.subr.mxu0 0.0
    %332 = vmatpush1.msra.mxu0 0.0
    %333 = vmatprep.subr.mxu0 0.0
    %334 = vmatpush1.msra.mxu0 0.0
    %335 = vmatprep.subr.mxu0 0.0
    %336 = vmatpush1.msra.mxu0 0.0
    %337 = vmatprep.subr.mxu0 0.0
    %338 = vmatpush1.msra.mxu0 0.0
    %339 = vmatprep.subr.mxu0 0.0
    %340 = vmatpush1.msra.mxu0 0.0
    %341 = vmatprep.subr.mxu0 0.0
    %342 = vmatpush1.msra.mxu0 0.0
    %343 = vmatprep.subr.mxu0 0.0
    %344 = vmatpush1.msra.mxu0 0.0
    %345 = vmatprep.subr.mxu0 0.0
    %346 = vmatpush1.msra.mxu0 0.0
    %347 = vmatprep.subr.mxu0 0.0
    %348 = vmatpush1.msra.mxu0 0.0
    %349 = vmatprep.subr.mxu0 0.0
    %350 = vmatpush1.msra.mxu0 0.0
    %351 = vmatprep.subr.mxu0 0.0
    %352 = vmatpush1.msra.mxu0 0.0
    %353 = vmatprep.subr.mxu0 0.0
    %354 = vmatpush1.msra.mxu0 0.0
    %355 = vmatprep.subr.mxu0 0.0
    %356 = vmatpush1.msra.mxu0 0.0
    %357 = vmatprep.subr.mxu0 0.0
    %358 = vmatpush1.msra.mxu0 0.0
    %359 = vmatprep.subr.mxu0 0.0
    %360 = vmatpush1.msra.mxu0 0.0
    %361 = vmatprep.subr.mxu0 0.0
    %362 = vmatpush1.msra.mxu0 0.0
    %363 = vmatprep.subr.mxu0 0.0
    %364 = vmatpush1.msra.mxu0 0.0
    %365 = vmatprep.subr.mxu0 0.0
    %366 = vmatpush1.msra.mxu0 0.0
    %367 = vmatprep.mubr.f32.mxu0 0.0
    %368 = vmatmul.mubr.f32.gmra.mrb[0].mxu0 %v301
    %v369 = vpop.f32.mrb[0].mxu0
    %v370 = vadd.f32 %v296, %v369
    %v371 = vpop.f32.mrb[0].mxu0
    %372 = vdwg.mxu0
    %373 = vst [vmem:[#allocation10] sm:$0xff] %v370
    // Predicated region
    $region46: #{tpu_custom_call.1} parent=1 // pred_check
      _
    $region47: #{tpu_custom_call.1} parent=1 // pred_check_branch
      %375 = sbr.rel (0) target = $region49
    $region48: #{tpu_custom_call.1} parent=1 // pred_region
      %s377 = ssub.s32 128, 128
      %378 = vsyncadd [#allocation4], %s377
      %s380 = sshll.u32 [#allocation10], 4
      %s381 = int_to_ptr.vmem [resolvable:$true] %s380
      %383 = dma.vmem_to_hbm [thread:$0]  %s381, 128, %s7, [#allocation4]
    $region49: #{tpu_custom_call.1} parent=1 // pred_fallthru
      _
    // Predicated region
    $region50: #{tpu_custom_call.1} parent=1 // pred_check
      _
    $region51: #{tpu_custom_call.1} parent=1 // pred_check_branch
      %385 = sbr.rel (0) target = $region53
    $region52: #{tpu_custom_call.1} parent=1 // pred_region
      %386 = dma.done [#allocation4], 128
    $region53: #{tpu_custom_call.1} parent=1 // pred_fallthru
      _
    %387 = vsyncpa [#allocation3], 1
    %388 = vsyncpa [#allocation6], 1
    %389 = vsyncpa [#allocation9], 1
    %390 = vsyncpa [#allocation4], 1

</llo_original>
